<compile_context>
chip_gen: v6e
topology: v6e:2x2x1
jax: 0.10.0
libtpu: 0.0.40
codegen_flags: <defaults>
</compile_context>

<pallas_src>
import functools

import jax
import jax.numpy as jnp
from jax.experimental import pallas as pl
from jax.experimental.pallas import tpu as pltpu

HIDDEN = 128


def simplenet_kernel(x_ref, w1_ref, b1_ref, w2_ref, b2_ref, w3_ref, b3_ref,
                     o_ref, *, use_mxu_fc3):
    # x_ref : (1, TM)      batch-on-lanes input tile
    # w1_ref: (128, 1)     fc1.weight  (PyTorch (out, in) layout)
    # b1_ref: (128, 1)
    # w2_ref: (128, 128)   fc2.weight
    # b2_ref: (128, 1)
    # w3_ref: (1, 128) if use_mxu_fc3 else (128, 1)
    # b3_ref: (1,) scalar in SMEM
    # o_ref : (1, TM)
    x_row = x_ref[...]                                           # (1, TM)

    # fc1 + ReLU: K=1 contraction -> VPU broadcast multiply (no degenerate MXU use).
    h1 = jnp.maximum(w1_ref[...] * x_row + b1_ref[...], 0.0)     # (128, TM)

    # fc2 + ReLU: the one full matmul, on the MXU.
    h2 = jnp.dot(w2_ref[...], h1, preferred_element_type=jnp.float32) + b2_ref[...]
    h2 = jnp.maximum(h2, 0.0)                                    # (128, TM)

    # fc3: MXU (1,128)@(128,TM) on v6e/v7x (MXU has slack; frees VALU/XLU),
    # or VPU multiply + sublane reduce on v5e.
    if use_mxu_fc3:
        out = jnp.dot(w3_ref[...], h2, preferred_element_type=jnp.float32)   # (1, TM)
    else:
        out = jnp.sum(h2 * w3_ref[...], axis=0, keepdims=True)               # (1, TM)

    o_ref[...] = (out + b3_ref[0]).astype(o_ref.dtype)


def _round_up(n, m):
    return ((n + m - 1) // m) * m


def simplenet_forward(x, params, *, tm=4096, use_mxu_fc3=None, num_cores=None):
    """x: (B, 1) float32.  Returns (B, 1) float32."""
    B = x.shape[0]

    if use_mxu_fc3 is None or num_cores is None:
        kind = jax.devices()[0].device_kind.lower()
        if use_mxu_fc3 is None:
            # v5e: 128x128 MXU is already exactly filled by fc2 and has less slack.
            use_mxu_fc3 = "v5" not in kind
        if num_cores is None:
            num_cores = 2 if "v7" in kind else 1      # v7x: 2 TensorCores / chip

    # Lane tile: multiple of 128, big enough to amortize ~0.35us/step pipeline
    # overhead, split so every TensorCore gets at least one tile.
    per_core = pl.cdiv(B, num_cores)
    tm = max(128, min(tm, _round_up(per_core, 128)))
    num_tiles = pl.cdiv(B, tm)

    # Batch-on-lanes at the true extent: (B,1) -> (1,B) is a free reshape; the
    # ragged last tile (if B % tm != 0) is masked by Pallas at the boundary.
    x_row = x.reshape(1, B)

    w1c, b1c = params["w1"], params["b1"]         # (128, 1), (128, 1)
    w2, b2c = params["w2"], params["b2"]          # (128, 128), (128, 1)
    w3c, b3 = params["w3"], params["b3"]          # (128, 1), (1,)
    w3_arg = w3c.reshape(1, HIDDEN) if use_mxu_fc3 else w3c
    w3_spec = (pl.BlockSpec((1, HIDDEN), lambda i: (0, 0)) if use_mxu_fc3
               else pl.BlockSpec((HIDDEN, 1), lambda i: (0, 0)))

    flops = 2 * HIDDEN * HIDDEN * B + 6 * HIDDEN * B
    bytes_accessed = 8 * B + (HIDDEN * HIDDEN + 3 * HIDDEN + 1) * 4

    out_row = pl.pallas_call(
        functools.partial(simplenet_kernel, use_mxu_fc3=use_mxu_fc3),
        out_shape=jax.ShapeDtypeStruct((1, B), jnp.float32),
        grid=(num_tiles,),
        in_specs=[
            pl.BlockSpec((1, tm), lambda i: (0, i)),             # x tile (lane-dense)
            pl.BlockSpec((HIDDEN, 1), lambda i: (0, 0)),         # w1 (resident)
            pl.BlockSpec((HIDDEN, 1), lambda i: (0, 0)),         # b1
            pl.BlockSpec((HIDDEN, HIDDEN), lambda i: (0, 0)),    # w2
            pl.BlockSpec((HIDDEN, 1), lambda i: (0, 0)),         # b2
            w3_spec,                                             # w3
            pl.BlockSpec(memory_space=pltpu.MemorySpace.SMEM),   # b3 scalar (1,)
        ],
        out_specs=pl.BlockSpec((1, tm), lambda i: (0, i)),       # lane-dense store
        compiler_params=pltpu.CompilerParams(
            dimension_semantics=("parallel",),        # v7x: shard batch over 2 TCs
            vmem_limit_bytes=32 * 1024 * 1024,        # safe for tm=4096 on v5e/v6e/v7x
        ),
        cost_estimate=pl.CostEstimate(
            flops=flops, transcendentals=0, bytes_accessed=bytes_accessed),
    )(x_row, w1c, b1c, w2, b2c, w3_arg, b3)

    return out_row.reshape(B, 1)


def init_params(key):
    """Deterministic init matching the PyTorch module's shapes, stored in the
    layouts the kernel expects:
      w1: (128, 1)  = fc1.weight          b1: (128, 1)
      w2: (128,128) = fc2.weight          b2: (128, 1)
      w3: (128, 1)  = fc3.weight^T        b3: (1,)
    """
    k1, k2, k3, k4, k5, k6 = jax.random.split(key, 6)

    def uniform(k, shape, fan_in):
        bound = 1.0 / jnp.sqrt(fan_in)
        return jax.random.uniform(k, shape, jnp.float32, -bound, bound)

    return {
        "w1": uniform(k1, (HIDDEN, 1), 1.0),
        "b1": uniform(k2, (HIDDEN, 1), 1.0),
        "w2": uniform(k3, (HIDDEN, HIDDEN), float(HIDDEN)),
        "b2": uniform(k4, (HIDDEN, 1), float(HIDDEN)),
        "w3": uniform(k5, (HIDDEN, 1), float(HIDDEN)),
        "b3": uniform(k6, (1,), float(HIDDEN)),
    }


def reference_forward(x, p):
    """Pure-JAX reference in the PyTorch convention (y = x @ W^T + b)."""
    h1 = jnp.maximum(x @ p["w1"].T + p["b1"][:, 0], 0.0)    # (B, 128)
    h2 = jnp.maximum(h1 @ p["w2"].T + p["b2"][:, 0], 0.0)   # (B, 128)
    return h2 @ p["w3"] + p["b3"][0]                        # (B, 1)


if __name__ == "__main__":
    key = jax.random.PRNGKey(0)
    pkey, xkey, xkey2 = jax.random.split(key, 3)
    params = init_params(pkey)

    # Small batch: single ragged tile (8 valid lanes of a 128-lane block),
    # device-auto fc3 path.
    x = jax.random.normal(xkey, (8, 1), jnp.float32)
    out = jax.block_until_ready(simplenet_forward(x, params))
    ref = reference_forward(x, params)
    assert out.shape == (8, 1)
    assert jnp.allclose(out, ref, atol=1e-5, rtol=1e-5)

    # Multi-tile ragged batch; exercise both fc3 code paths and the >=2-tile
    # (two-TensorCore) split regardless of the chip we run on.
    x2 = jax.random.normal(xkey2, (300, 1), jnp.float32)
    ref2 = reference_forward(x2, params)
    for mxu_fc3 in (False, True):
        out2 = jax.block_until_ready(
            simplenet_forward(x2, params, tm=128, use_mxu_fc3=mxu_fc3, num_cores=2))
        assert out2.shape == (300, 1)
        assert jnp.allclose(out2, ref2, atol=1e-5, rtol=1e-5)

    print("KERNEL_OK")
</pallas_src>

<mosaic_0001>
module attributes {stable_mosaic.version = 11 : i64} {
  func.func @simplenet_kernel(%arg0: i32, %arg1: memref<1x128xf32, #tpu.memory_space<vmem>>, %arg2: memref<128x1xf32, #tpu.memory_space<vmem>>, %arg3: memref<128x1xf32, #tpu.memory_space<vmem>>, %arg4: memref<128x128xf32, #tpu.memory_space<vmem>>, %arg5: memref<128x1xf32, #tpu.memory_space<vmem>>, %arg6: memref<1x128xf32, #tpu.memory_space<vmem>>, %arg7: memref<1xf32, #tpu.memory_space<smem>>, %arg8: memref<1x128xf32, #tpu.memory_space<vmem>>) attributes {dimension_semantics = [#tpu.dimension_semantics<parallel>], iteration_bounds = array<i64: 1>, scalar_prefetch = 0 : i64, scratch_operands = 0 : i64, tpu.core_type = #tpu.core_type<tc>, window_params = [{transform_indices = @transform_0, window_bounds = array<i64: 1, 128>}, {pipeline_mode = #tpu.pipeline_mode<synchronous>, transform_indices = @transform_1, window_bounds = array<i64: 128, 1>}, {pipeline_mode = #tpu.pipeline_mode<synchronous>, transform_indices = @transform_2, window_bounds = array<i64: 128, 1>}, {pipeline_mode = #tpu.pipeline_mode<synchronous>, transform_indices = @transform_3, window_bounds = array<i64: 128, 128>}, {pipeline_mode = #tpu.pipeline_mode<synchronous>, transform_indices = @transform_4, window_bounds = array<i64: 128, 1>}, {pipeline_mode = #tpu.pipeline_mode<synchronous>, transform_indices = @transform_5, window_bounds = array<i64: 1, 128>}, {transform_indices = @transform_6, window_bounds = array<i64: 1>}, {transform_indices = @transform_7, window_bounds = array<i64: 1, 128>}]} {
    %c0 = arith.constant 0 : index
    %c0_0 = arith.constant 0 : index
    %0 = vector.load %arg1[%c0, %c0_0] : memref<1x128xf32, #tpu.memory_space<vmem>>, vector<1x128xf32>
    %c0_1 = arith.constant 0 : index
    %c0_2 = arith.constant 0 : index
    %1 = vector.load %arg2[%c0_1, %c0_2] : memref<128x1xf32, #tpu.memory_space<vmem>>, vector<128x1xf32>
    %2 = vector.broadcast %1 : vector<128x1xf32> to vector<128x128xf32>
    %3 = vector.broadcast %0 : vector<1x128xf32> to vector<128x128xf32>
    %4 = arith.mulf %2, %3 : vector<128x128xf32>
    %c0_3 = arith.constant 0 : index
    %c0_4 = arith.constant 0 : index
    %5 = vector.load %arg3[%c0_3, %c0_4] : memref<128x1xf32, #tpu.memory_space<vmem>>, vector<128x1xf32>
    %6 = vector.broadcast %5 : vector<128x1xf32> to vector<128x128xf32>
    %7 = arith.addf %4, %6 : vector<128x128xf32>
    %cst = arith.constant 0.000000e+00 : f32
    %8 = vector.broadcast %cst : f32 to vector<128x128xf32>
    %9 = arith.maximumf %7, %8 : vector<128x128xf32>
    %c0_5 = arith.constant 0 : index
    %c0_6 = arith.constant 0 : index
    %10 = vector.load %arg4[%c0_5, %c0_6] : memref<128x128xf32, #tpu.memory_space<vmem>>, vector<128x128xf32>
    %cst_7 = arith.constant dense<0.000000e+00> : vector<128x128xf32>
    %11 = tpu.matmul %10, %9, %cst_7 {dimension_numbers = #tpu.dot_dimension_numbers<[1], [0], [0], [1], [0, 0, 1, 1], [], []>} : vector<128x128xf32>, vector<128x128xf32>, vector<128x128xf32> -> vector<128x128xf32>
    %c0_8 = arith.constant 0 : index
    %c0_9 = arith.constant 0 : index
    %12 = vector.load %arg5[%c0_8, %c0_9] : memref<128x1xf32, #tpu.memory_space<vmem>>, vector<128x1xf32>
    %13 = vector.broadcast %12 : vector<128x1xf32> to vector<128x128xf32>
    %14 = arith.addf %11, %13 : vector<128x128xf32>
    %cst_10 = arith.constant 0.000000e+00 : f32
    %15 = vector.broadcast %cst_10 : f32 to vector<128x128xf32>
    %16 = arith.maximumf %14, %15 : vector<128x128xf32>
    %c0_11 = arith.constant 0 : index
    %c0_12 = arith.constant 0 : index
    %17 = vector.load %arg6[%c0_11, %c0_12] : memref<1x128xf32, #tpu.memory_space<vmem>>, vector<1x128xf32>
    %cst_13 = arith.constant dense<0.000000e+00> : vector<1x128xf32>
    %18 = tpu.matmul %17, %16, %cst_13 {dimension_numbers = #tpu.dot_dimension_numbers<[1], [0], [0], [1], [0, 0, 1, 1], [], []>} : vector<1x128xf32>, vector<128x128xf32>, vector<1x128xf32> -> vector<1x128xf32>
    %c0_14 = arith.constant 0 : index
    %19 = memref.load %arg7[%c0_14] : memref<1xf32, #tpu.memory_space<smem>>
    %20 = vector.broadcast %19 : f32 to vector<1x128xf32>
    %21 = arith.addf %18, %20 : vector<1x128xf32>
    %c0_15 = arith.constant 0 : index
    %c0_16 = arith.constant 0 : index
    %22 = vector.load %arg8[%c0_15, %c0_16] : memref<1x128xf32, #tpu.memory_space<vmem>>, vector<1x128xf32>
    tpu.vector_store %arg8[%c0_15, %c0_16], %21 {strides = array<i32>} : memref<1x128xf32, #tpu.memory_space<vmem>>, vector<1x128xf32>,
    return
  }
  func.func @transform_0(%arg0: i32) -> (i32, i32) {
    %c0_i32 = arith.constant 0 : i32
    %c0_i32_0 = arith.constant 0 : i32
    return %c0_i32, %arg0 : i32, i32
  }
  func.func @transform_1(%arg0: i32) -> (i32, i32) {
    %c0_i32 = arith.constant 0 : i32
    %c0_i32_0 = arith.constant 0 : i32
    %c0_i32_1 = arith.constant 0 : i32
    return %c0_i32, %c0_i32_0 : i32, i32
  }
  func.func @transform_2(%arg0: i32) -> (i32, i32) {
    %c0_i32 = arith.constant 0 : i32
    %c0_i32_0 = arith.constant 0 : i32
    %c0_i32_1 = arith.constant 0 : i32
    return %c0_i32, %c0_i32_0 : i32, i32
  }
  func.func @transform_3(%arg0: i32) -> (i32, i32) {
    %c0_i32 = arith.constant 0 : i32
    %c0_i32_0 = arith.constant 0 : i32
    %c0_i32_1 = arith.constant 0 : i32
    return %c0_i32, %c0_i32_0 : i32, i32
  }
  func.func @transform_4(%arg0: i32) -> (i32, i32) {
    %c0_i32 = arith.constant 0 : i32
    %c0_i32_0 = arith.constant 0 : i32
    %c0_i32_1 = arith.constant 0 : i32
    return %c0_i32, %c0_i32_0 : i32, i32
  }
  func.func @transform_5(%arg0: i32) -> (i32, i32) {
    %c0_i32 = arith.constant 0 : i32
    %c0_i32_0 = arith.constant 0 : i32
    %c0_i32_1 = arith.constant 0 : i32
    return %c0_i32, %c0_i32_0 : i32, i32
  }
  func.func @transform_6(%arg0: i32) -> i32 {
    %c0_i32 = arith.constant 0 : i32
    %c0_i32_0 = arith.constant 0 : i32
    return %c0_i32 : i32
  }
  func.func @transform_7(%arg0: i32) -> (i32, i32) {
    %c0_i32 = arith.constant 0 : i32
    %c0_i32_0 = arith.constant 0 : i32
    return %c0_i32, %arg0 : i32, i32
  }
}

</mosaic_0001>

<llo_original>
// kernel: tpu_custom_call.1
$region0: #{tpu_custom_call.1}
  #allocation0 [shape = 'u32[]', space=smem, size = 0x4, offset = 0x4, fixed_abs, tag = 'smem constant byte address 0x4 - core index']
  #allocation1 [shape = 'u32[144,128]{1,0:T(1,128)}', space=vmem, size = 0x12000, scoped, tag = 'internal scratch']
  #allocation2 [shape = 'f32[1]{0:T(128)S(6)}', space=smem, size = 0x200, scoped, tag = 'scoped memory for tpu_custom_call.1']
  %s0 = inlined_call_operand.vmem [shape: f32[1,8], index: 0, kind: input, shape index: {}]
  %s1 = inlined_call_operand.vmem [shape: f32[128,1], index: 1, kind: input, shape index: {}]
  %s2 = inlined_call_operand.vmem [shape: f32[128,1], index: 2, kind: input, shape index: {}]
  %s3 = inlined_call_operand.vmem [shape: f32[128,128], index: 3, kind: input, shape index: {}]
  %s4 = inlined_call_operand.vmem [shape: f32[128,1], index: 4, kind: input, shape index: {}]
  %s5 = inlined_call_operand.vmem [shape: f32[1,128], index: 5, kind: input, shape index: {}]
  %s6 = inlined_call_operand.<no memory space> [shape: f32[1], index: 6, kind: input, shape index: {}]
  %s7 = inlined_call_operand.hbm [shape: f32[1,8], index: 7, kind: output, shape index: {}]
  %s8 = sld [smem:[#allocation0]]
  $region38: #{tpu_custom_call.1} parent=0
    _
  %s10 = ssub.s32 1, %s8
  %s11 = scalar_select 0, %s10, %s8
  %12 = sst [smem:[#allocation2]] %s6
  $region1: #{tpu_custom_call.1} parent=0
    #allocation3 [shape = 'u8[512]{0}', space=vmem, size = 0x400, scoped, tag = 'output window, operand 0, single buffered']
    #allocation4 [shape = 's32[1]{0}', space=sflag, size = 0x4, scoped, tag = 'scoped memory for tpu_custom_call.1']
    %13 = vsyncpa [#allocation4], 0
    // Predicated region
    $region2: #{tpu_custom_call.1} parent=1 // pred_check
      _
    $region3: #{tpu_custom_call.1} parent=1 // pred_check_branch
      %15 = sbr.rel (0) target = $region5
    $region4: #{tpu_custom_call.1} parent=1 // pred_region
      _
    $region5: #{tpu_custom_call.1} parent=1 // pred_fallthru
      _
    // Predicated region
    $region6: #{tpu_custom_call.1} parent=1 // pred_check
      _
    $region7: #{tpu_custom_call.1} parent=1 // pred_check_branch
      %17 = sbr.rel (0) target = $region9
    $region8: #{tpu_custom_call.1} parent=1 // pred_region
      _
    $region9: #{tpu_custom_call.1} parent=1 // pred_fallthru
      _
    // Predicated region
    $region10: #{tpu_custom_call.1} parent=1 // pred_check
      _
    $region11: #{tpu_custom_call.1} parent=1 // pred_check_branch
      %19 = sbr.rel (0) target = $region13
    $region12: #{tpu_custom_call.1} parent=1 // pred_region
      _
    $region13: #{tpu_custom_call.1} parent=1 // pred_fallthru
      _
    // Predicated region
    $region14: #{tpu_custom_call.1} parent=1 // pred_check
      _
    $region15: #{tpu_custom_call.1} parent=1 // pred_check_branch
      %21 = sbr.rel (0) target = $region17
    $region16: #{tpu_custom_call.1} parent=1 // pred_region
      _
    $region17: #{tpu_custom_call.1} parent=1 // pred_fallthru
      _
    // Predicated region
    $region18: #{tpu_custom_call.1} parent=1 // pred_check
      _
    $region19: #{tpu_custom_call.1} parent=1 // pred_check_branch
      %23 = sbr.rel (0) target = $region21
    $region20: #{tpu_custom_call.1} parent=1 // pred_region
      _
    $region21: #{tpu_custom_call.1} parent=1 // pred_fallthru
      _
    // Predicated region
    $region22: #{tpu_custom_call.1} parent=1 // pred_check
      _
    $region23: #{tpu_custom_call.1} parent=1 // pred_check_branch
      %25 = sbr.rel (0) target = $region25
    $region24: #{tpu_custom_call.1} parent=1 // pred_region
      _
    $region25: #{tpu_custom_call.1} parent=1 // pred_fallthru
      _
    // Predicated region
    $region26: #{tpu_custom_call.1} parent=1 // pred_check
      _
    $region27: #{tpu_custom_call.1} parent=1 // pred_check_branch
      %27 = sbr.rel (0) target = $region29
    $region28: #{tpu_custom_call.1} parent=1 // pred_region
      _
    $region29: #{tpu_custom_call.1} parent=1 // pred_fallthru
      _
    %v28 = vld [vmem:[%s0] sm:$0x1]
    %v29 = vld [vmem:[%s1] sm:$0xff]
    %v30 = vld [vmem:[%s1 + $0x8] sm:$0xff]
    %v31 = vld [vmem:[%s1 + $0x10] sm:$0xff]
    %v32 = vld [vmem:[%s1 + $0x18] sm:$0xff]
    %v33 = vld [vmem:[%s1 + $0x20] sm:$0xff]
    %v34 = vld [vmem:[%s1 + $0x28] sm:$0xff]
    %v35 = vld [vmem:[%s1 + $0x30] sm:$0xff]
    %v36 = vld [vmem:[%s1 + $0x38] sm:$0xff]
    %v37 = vld [vmem:[%s1 + $0x40] sm:$0xff]
    %v38 = vld [vmem:[%s1 + $0x48] sm:$0xff]
    %v39 = vld [vmem:[%s1 + $0x50] sm:$0xff]
    %v40 = vld [vmem:[%s1 + $0x58] sm:$0xff]
    %v41 = vld [vmem:[%s1 + $0x60] sm:$0xff]
    %v42 = vld [vmem:[%s1 + $0x68] sm:$0xff]
    %v43 = vld [vmem:[%s1 + $0x70] sm:$0xff]
    %v44 = vld [vmem:[%s1 + $0x78] sm:$0xff]
    %46 = vset.pattern.permute.xlu0 0
    %47 = vperm.xlu0 %46, %v29
    %v48 = vpop.permute.xlu0 %47
    %51 = vset.pattern.permute.xlu0 0
    %52 = vperm.xlu0 %51, %v30
    %v53 = vpop.permute.xlu0 %52
    %56 = vset.pattern.permute.xlu0 0
    %57 = vperm.xlu0 %56, %v31
    %v58 = vpop.permute.xlu0 %57
    %61 = vset.pattern.permute.xlu0 0
    %62 = vperm.xlu0 %61, %v32
    %v63 = vpop.permute.xlu0 %62
    %66 = vset.pattern.permute.xlu0 0
    %67 = vperm.xlu0 %66, %v33
    %v68 = vpop.permute.xlu0 %67
    %71 = vset.pattern.permute.xlu0 0
    %72 = vperm.xlu0 %71, %v34
    %v73 = vpop.permute.xlu0 %72
    %76 = vset.pattern.permute.xlu0 0
    %77 = vperm.xlu0 %76, %v35
    %v78 = vpop.permute.xlu0 %77
    %81 = vset.pattern.permute.xlu0 0
    %82 = vperm.xlu0 %81, %v36
    %v83 = vpop.permute.xlu0 %82
    %86 = vset.pattern.permute.xlu0 0
    %87 = vperm.xlu0 %86, %v37
    %v88 = vpop.permute.xlu0 %87
    %91 = vset.pattern.permute.xlu0 0
    %92 = vperm.xlu0 %91, %v38
    %v93 = vpop.permute.xlu0 %92
    %96 = vset.pattern.permute.xlu0 0
    %97 = vperm.xlu0 %96, %v39
    %v98 = vpop.permute.xlu0 %97
    %101 = vset.pattern.permute.xlu0 0
    %102 = vperm.xlu0 %101, %v40
    %v103 = vpop.permute.xlu0 %102
    %106 = vset.pattern.permute.xlu0 0
    %107 = vperm.xlu0 %106, %v41
    %v108 = vpop.permute.xlu0 %107
    %111 = vset.pattern.permute.xlu0 0
    %112 = vperm.xlu0 %111, %v42
    %v113 = vpop.permute.xlu0 %112
    %116 = vset.pattern.permute.xlu0 0
    %117 = vperm.xlu0 %116, %v43
    %v118 = vpop.permute.xlu0 %117
    %121 = vset.pattern.permute.xlu0 0
    %122 = vperm.xlu0 %121, %v44
    %v123 = vpop.permute.xlu0 %122
    %v126 = vlaneseq
    %v127 = vshrl.u32 %v126, 7
    %v128 = vsub.s32 0, %v127
    %v129 = vrot.slane %v28, %v128
    %v131 = vmul.f32 %v48, %v129
    %v132 = vmul.f32 %v53, %v129
    %v133 = vmul.f32 %v58, %v129
    %v134 = vmul.f32 %v63, %v129
    %v135 = vmul.f32 %v68, %v129
    %v136 = vmul.f32 %v73, %v129
    %v137 = vmul.f32 %v78, %v129
    %v138 = vmul.f32 %v83, %v129
    %v139 = vmul.f32 %v88, %v129
    %v140 = vmul.f32 %v93, %v129
    %v141 = vmul.f32 %v98, %v129
    %v142 = vmul.f32 %v103, %v129
    %v143 = vmul.f32 %v108, %v129
    %v144 = vmul.f32 %v113, %v129
    %v145 = vmul.f32 %v118, %v129
    %v146 = vmul.f32 %v123, %v129
    %v147 = vld [vmem:[%s2] sm:$0xff]
    %v148 = vld [vmem:[%s2 + $0x8] sm:$0xff]
    %v149 = vld [vmem:[%s2 + $0x10] sm:$0xff]
    %v150 = vld [vmem:[%s2 + $0x18] sm:$0xff]
    %v151 = vld [vmem:[%s2 + $0x20] sm:$0xff]
    %v152 = vld [vmem:[%s2 + $0x28] sm:$0xff]
    %v153 = vld [vmem:[%s2 + $0x30] sm:$0xff]
    %v154 = vld [vmem:[%s2 + $0x38] sm:$0xff]
    %v155 = vld [vmem:[%s2 + $0x40] sm:$0xff]
    %v156 = vld [vmem:[%s2 + $0x48] sm:$0xff]
    %v157 = vld [vmem:[%s2 + $0x50] sm:$0xff]
    %v158 = vld [vmem:[%s2 + $0x58] sm:$0xff]
    %v159 = vld [vmem:[%s2 + $0x60] sm:$0xff]
    %v160 = vld [vmem:[%s2 + $0x68] sm:$0xff]
    %v161 = vld [vmem:[%s2 + $0x70] sm:$0xff]
    %v162 = vld [vmem:[%s2 + $0x78] sm:$0xff]
    %164 = vset.pattern.permute.xlu0 0
    %165 = vperm.xlu0 %164, %v147
    %v166 = vpop.permute.xlu0 %165
    %169 = vset.pattern.permute.xlu0 0
    %170 = vperm.xlu0 %169, %v148
    %v171 = vpop.permute.xlu0 %170
    %174 = vset.pattern.permute.xlu0 0
    %175 = vperm.xlu0 %174, %v149
    %v176 = vpop.permute.xlu0 %175
    %179 = vset.pattern.permute.xlu0 0
    %180 = vperm.xlu0 %179, %v150
    %v181 = vpop.permute.xlu0 %180
    %184 = vset.pattern.permute.xlu0 0
    %185 = vperm.xlu0 %184, %v151
    %v186 = vpop.permute.xlu0 %185
    %189 = vset.pattern.permute.xlu0 0
    %190 = vperm.xlu0 %189, %v152
    %v191 = vpop.permute.xlu0 %190
    %194 = vset.pattern.permute.xlu0 0
    %195 = vperm.xlu0 %194, %v153
    %v196 = vpop.permute.xlu0 %195
    %199 = vset.pattern.permute.xlu0 0
    %200 = vperm.xlu0 %199, %v154
    %v201 = vpop.permute.xlu0 %200
    %204 = vset.pattern.permute.xlu0 0
    %205 = vperm.xlu0 %204, %v155
    %v206 = vpop.permute.xlu0 %205
    %209 = vset.pattern.permute.xlu0 0
    %210 = vperm.xlu0 %209, %v156
    %v211 = vpop.permute.xlu0 %210
    %214 = vset.pattern.permute.xlu0 0
    %215 = vperm.xlu0 %214, %v157
    %v216 = vpop.permute.xlu0 %215
    %219 = vset.pattern.permute.xlu0 0
    %220 = vperm.xlu0 %219, %v158
    %v221 = vpop.permute.xlu0 %220
    %224 = vset.pattern.permute.xlu0 0
    %225 = vperm.xlu0 %224, %v159
    %v226 = vpop.permute.xlu0 %225
    %229 = vset.pattern.permute.xlu0 0
    %230 = vperm.xlu0 %229, %v160
    %v231 = vpop.permute.xlu0 %230
    %234 = vset.pattern.permute.xlu0 0
    %235 = vperm.xlu0 %234, %v161
    %v236 = vpop.permute.xlu0 %235
    %239 = vset.pattern.permute.xlu0 0
    %240 = vperm.xlu0 %239, %v162
    %v241 = vpop.permute.xlu0 %240
    %v243 = vadd.f32 %v131, %v166
    %v244 = vadd.f32 %v132, %v171
    %v245 = vadd.f32 %v133, %v176
    %v246 = vadd.f32 %v134, %v181
    %v247 = vadd.f32 %v135, %v186
    %v248 = vadd.f32 %v136, %v191
    %v249 = vadd.f32 %v137, %v196
    %v250 = vadd.f32 %v138, %v201
    %v251 = vadd.f32 %v139, %v206
    %v252 = vadd.f32 %v140, %v211
    %v253 = vadd.f32 %v141, %v216
    %v254 = vadd.f32 %v142, %v221
    %v255 = vadd.f32 %v143, %v226
    %v256 = vadd.f32 %v144, %v231
    %v257 = vadd.f32 %v145, %v236
    %v258 = vadd.f32 %v146, %v241
    %v259 = vmax.f32 %v243, 0.0
    %v260 = vmax.f32 %v244, 0.0
    %v261 = vmax.f32 %v245, 0.0
    %v262 = vmax.f32 %v246, 0.0
    %v263 = vmax.f32 %v247, 0.0
    %v264 = vmax.f32 %v248, 0.0
    %v265 = vmax.f32 %v249, 0.0
    %v266 = vmax.f32 %v250, 0.0
    %v267 = vmax.f32 %v251, 0.0
    %v268 = vmax.f32 %v252, 0.0
    %v269 = vmax.f32 %v253, 0.0
    %v270 = vmax.f32 %v254, 0.0
    %v271 = vmax.f32 %v255, 0.0
    %v272 = vmax.f32 %v256, 0.0
    %v273 = vmax.f32 %v257, 0.0
    %v274 = vmax.f32 %v258, 0.0
    %v275 = vld [vmem:[%s3] sm:$0xff]
    %v276 = vld [vmem:[%s3 + $0x8] sm:$0xff]
    %v277 = vld [vmem:[%s3 + $0x10] sm:$0xff]
    %v278 = vld [vmem:[%s3 + $0x18] sm:$0xff]
    %v279 = vld [vmem:[%s3 + $0x20] sm:$0xff]
    %v280 = vld [vmem:[%s3 + $0x28] sm:$0xff]
    %v281 = vld [vmem:[%s3 + $0x30] sm:$0xff]
    %v282 = vld [vmem:[%s3 + $0x38] sm:$0xff]
    %v283 = vld [vmem:[%s3 + $0x40] sm:$0xff]
    %v284 = vld [vmem:[%s3 + $0x48] sm:$0xff]
    %v285 = vld [vmem:[%s3 + $0x50] sm:$0xff]
    %v286 = vld [vmem:[%s3 + $0x58] sm:$0xff]
    %v287 = vld [vmem:[%s3 + $0x60] sm:$0xff]
    %v288 = vld [vmem:[%s3 + $0x68] sm:$0xff]
    %v289 = vld [vmem:[%s3 + $0x70] sm:$0xff]
    %v290 = vld [vmem:[%s3 + $0x78] sm:$0xff]
    %v291 = vld [vmem:[%s4] sm:$0xff]
    %v292 = vld [vmem:[%s4 + $0x8] sm:$0xff]
    %v293 = vld [vmem:[%s4 + $0x10] sm:$0xff]
    %v294 = vld [vmem:[%s4 + $0x18] sm:$0xff]
    %v295 = vld [vmem:[%s4 + $0x20] sm:$0xff]
    %v296 = vld [vmem:[%s4 + $0x28] sm:$0xff]
    %v297 = vld [vmem:[%s4 + $0x30] sm:$0xff]
    %v298 = vld [vmem:[%s4 + $0x38] sm:$0xff]
    %v299 = vld [vmem:[%s4 + $0x40] sm:$0xff]
    %v300 = vld [vmem:[%s4 + $0x48] sm:$0xff]
    %v301 = vld [vmem:[%s4 + $0x50] sm:$0xff]
    %v302 = vld [vmem:[%s4 + $0x58] sm:$0xff]
    %v303 = vld [vmem:[%s4 + $0x60] sm:$0xff]
    %v304 = vld [vmem:[%s4 + $0x68] sm:$0xff]
    %v305 = vld [vmem:[%s4 + $0x70] sm:$0xff]
    %v306 = vld [vmem:[%s4 + $0x78] sm:$0xff]
    %308 = vset.pattern.permute.xlu0 0
    %309 = vperm.xlu0 %308, %v291
    %v310 = vpop.permute.xlu0 %309
    %313 = vset.pattern.permute.xlu0 0
    %314 = vperm.xlu0 %313, %v292
    %v315 = vpop.permute.xlu0 %314
    %318 = vset.pattern.permute.xlu0 0
    %319 = vperm.xlu0 %318, %v293
    %v320 = vpop.permute.xlu0 %319
    %323 = vset.pattern.permute.xlu0 0
    %324 = vperm.xlu0 %323, %v294
    %v325 = vpop.permute.xlu0 %324
    %328 = vset.pattern.permute.xlu0 0
    %329 = vperm.xlu0 %328, %v295
    %v330 = vpop.permute.xlu0 %329
    %333 = vset.pattern.permute.xlu0 0
    %334 = vperm.xlu0 %333, %v296
    %v335 = vpop.permute.xlu0 %334
    %338 = vset.pattern.permute.xlu0 0
    %339 = vperm.xlu0 %338, %v297
    %v340 = vpop.permute.xlu0 %339
    %343 = vset.pattern.permute.xlu0 0
    %344 = vperm.xlu0 %343, %v298
    %v345 = vpop.permute.xlu0 %344
    %348 = vset.pattern.permute.xlu0 0
    %349 = vperm.xlu0 %348, %v299
    %v350 = vpop.permute.xlu0 %349
    %353 = vset.pattern.permute.xlu0 0
    %354 = vperm.xlu0 %353, %v300
    %v355 = vpop.permute.xlu0 %354
    %358 = vset.pattern.permute.xlu0 0
    %359 = vperm.xlu0 %358, %v301
    %v360 = vpop.permute.xlu0 %359
    %363 = vset.pattern.permute.xlu0 0
    %364 = vperm.xlu0 %363, %v302
    %v365 = vpop.permute.xlu0 %364
    %368 = vset.pattern.permute.xlu0 0
    %369 = vperm.xlu0 %368, %v303
    %v370 = vpop.permute.xlu0 %369
    %373 = vset.pattern.permute.xlu0 0
    %374 = vperm.xlu0 %373, %v304
    %v375 = vpop.permute.xlu0 %374
    %378 = vset.pattern.permute.xlu0 0
    %379 = vperm.xlu0 %378, %v305
    %v380 = vpop.permute.xlu0 %379
    %383 = vset.pattern.permute.xlu0 0
    %384 = vperm.xlu0 %383, %v306
    %v385 = vpop.permute.xlu0 %384
    %387 = vmatprep.subr.mxu0 0.0
    %388 = vmatpush1.msra.mxu0 %v274
    %389 = vmatprep.subr.mxu0 0.0
    %390 = vmatpush1.msra.mxu0 %v273
    %391 = vmatprep.subr.mxu0 0.0
    %392 = vmatpush1.msra.mxu0 %v272
    %393 = vmatprep.subr.mxu0 0.0
    %394 = vmatpush1.msra.mxu0 %v271
    %395 = vmatprep.subr.mxu0 0.0
    %396 = vmatpush1.msra.mxu0 %v270
    %397 = vmatprep.subr.mxu0 0.0
    %398 = vmatpush1.msra.mxu0 %v269
    %399 = vmatprep.subr.mxu0 0.0
    %400 = vmatpush1.msra.mxu0 %v268
    %401 = vmatprep.subr.mxu0 0.0
    %402 = vmatpush1.msra.mxu0 %v267
    %403 = vmatprep.subr.mxu0 0.0
    %404 = vmatpush1.msra.mxu0 %v266
    %405 = vmatprep.subr.mxu0 0.0
    %406 = vmatpush1.msra.mxu0 %v265
    %407 = vmatprep.subr.mxu0 0.0
    %408 = vmatpush1.msra.mxu0 %v264
    %409 = vmatprep.subr.mxu0 0.0
    %410 = vmatpush1.msra.mxu0 %v263
    %411 = vmatprep.subr.mxu0 0.0
    %412 = vmatpush1.msra.mxu0 %v262
    %413 = vmatprep.subr.mxu0 0.0
    %414 = vmatpush1.msra.mxu0 %v261
    %415 = vmatprep.subr.mxu0 0.0
    %416 = vmatpush1.msra.mxu0 %v260
    %417 = vmatprep.subr.mxu0 0.0
    %418 = vmatpush1.msra.mxu0 %v259
    %419 = vmatprep.subr.mxu0 0.0
    %420 = vmatpush2.msra.mxu0 0.0
    %421 = vmatprep.subr.mxu0 0.0
    %422 = vmatpush2.msra.mxu0 0.0
    %423 = vmatprep.subr.mxu0 0.0
    %424 = vmatpush2.msra.mxu0 0.0
    %425 = vmatprep.subr.mxu0 0.0
    %426 = vmatpush2.msra.mxu0 0.0
    %427 = vmatprep.subr.mxu0 0.0
    %428 = vmatpush2.msra.mxu0 0.0
    %429 = vmatprep.subr.mxu0 0.0
    %430 = vmatpush2.msra.mxu0 0.0
    %431 = vmatprep.subr.mxu0 0.0
    %432 = vmatpush2.msra.mxu0 0.0
    %433 = vmatprep.subr.mxu0 0.0
    %434 = vmatpush2.msra.mxu0 0.0
    %435 = vmatprep.subr.mxu0 0.0
    %436 = vmatpush2.msra.mxu0 0.0
    %437 = vmatprep.subr.mxu0 0.0
    %438 = vmatpush2.msra.mxu0 0.0
    %439 = vmatprep.subr.mxu0 0.0
    %440 = vmatpush2.msra.mxu0 0.0
    %441 = vmatprep.subr.mxu0 0.0
    %442 = vmatpush2.msra.mxu0 0.0
    %443 = vmatprep.subr.mxu0 0.0
    %444 = vmatpush2.msra.mxu0 0.0
    %445 = vmatprep.subr.mxu0 0.0
    %446 = vmatpush2.msra.mxu0 0.0
    %447 = vmatprep.subr.mxu0 0.0
    %448 = vmatpush2.msra.mxu0 0.0
    %449 = vmatprep.subr.mxu0 0.0
    %450 = vmatpush2.msra.mxu0 0.0
    %451 = vmatprep.mubr.f32.mxu0 0.0
    %452 = vmatmul.mubr.f32.gmra.mxu0 %v275
    %v453 = vpop.f32.mrf.mxu0
    %v454 = vadd.f32 %v310, %v453
    %v455 = vpop.f32.mrf.mxu0
    %456 = vmatprep.mubr.f32.mxu0 0.0
    %457 = vmatmul.mubr.f32.gmra.mxu0 %v276
    %v458 = vpop.f32.mrf.mxu0
    %v459 = vadd.f32 %v315, %v458
    %v460 = vpop.f32.mrf.mxu0
    %461 = vmatprep.mubr.f32.mxu0 0.0
    %462 = vmatmul.mubr.f32.gmra.mxu0 %v277
    %v463 = vpop.f32.mrf.mxu0
    %v464 = vadd.f32 %v320, %v463
    %v465 = vpop.f32.mrf.mxu0
    %466 = vmatprep.mubr.f32.mxu0 0.0
    %467 = vmatmul.mubr.f32.gmra.mxu0 %v278
    %v468 = vpop.f32.mrf.mxu0
    %v469 = vadd.f32 %v325, %v468
    %v470 = vpop.f32.mrf.mxu0
    %471 = vmatprep.mubr.f32.mxu0 0.0
    %472 = vmatmul.mubr.f32.gmra.mxu0 %v279
    %v473 = vpop.f32.mrf.mxu0
    %v474 = vadd.f32 %v330, %v473
    %v475 = vpop.f32.mrf.mxu0
    %476 = vmatprep.mubr.f32.mxu0 0.0
    %477 = vmatmul.mubr.f32.gmra.mxu0 %v280
    %v478 = vpop.f32.mrf.mxu0
    %v479 = vadd.f32 %v335, %v478
    %v480 = vpop.f32.mrf.mxu0
    %481 = vmatprep.mubr.f32.mxu0 0.0
    %482 = vmatmul.mubr.f32.gmra.mxu0 %v281
    %v483 = vpop.f32.mrf.mxu0
    %v484 = vadd.f32 %v340, %v483
    %v485 = vpop.f32.mrf.mxu0
    %486 = vmatprep.mubr.f32.mxu0 0.0
    %487 = vmatmul.mubr.f32.gmra.mxu0 %v282
    %v488 = vpop.f32.mrf.mxu0
    %v489 = vadd.f32 %v345, %v488
    %v490 = vpop.f32.mrf.mxu0
    %491 = vmatprep.mubr.f32.mxu0 0.0
    %492 = vmatmul.mubr.f32.gmra.mxu0 %v283
    %v493 = vpop.f32.mrf.mxu0
    %v494 = vadd.f32 %v350, %v493
    %v495 = vpop.f32.mrf.mxu0
    %496 = vmatprep.mubr.f32.mxu0 0.0
    %497 = vmatmul.mubr.f32.gmra.mxu0 %v284
    %v498 = vpop.f32.mrf.mxu0
    %v499 = vadd.f32 %v355, %v498
    %v500 = vpop.f32.mrf.mxu0
    %501 = vmatprep.mubr.f32.mxu0 0.0
    %502 = vmatmul.mubr.f32.gmra.mxu0 %v285
    %v503 = vpop.f32.mrf.mxu0
    %v504 = vadd.f32 %v360, %v503
    %v505 = vpop.f32.mrf.mxu0
    %506 = vmatprep.mubr.f32.mxu0 0.0
    %507 = vmatmul.mubr.f32.gmra.mxu0 %v286
    %v508 = vpop.f32.mrf.mxu0
    %v509 = vadd.f32 %v365, %v508
    %v510 = vpop.f32.mrf.mxu0
    %511 = vmatprep.mubr.f32.mxu0 0.0
    %512 = vmatmul.mubr.f32.gmra.mxu0 %v287
    %v513 = vpop.f32.mrf.mxu0
    %v514 = vadd.f32 %v370, %v513
    %v515 = vpop.f32.mrf.mxu0
    %516 = vmatprep.mubr.f32.mxu0 0.0
    %517 = vmatmul.mubr.f32.gmra.mxu0 %v288
    %v518 = vpop.f32.mrf.mxu0
    %v519 = vadd.f32 %v375, %v518
    %v520 = vpop.f32.mrf.mxu0
    %521 = vmatprep.mubr.f32.mxu0 0.0
    %522 = vmatmul.mubr.f32.gmra.mxu0 %v289
    %v523 = vpop.f32.mrf.mxu0
    %v524 = vadd.f32 %v380, %v523
    %v525 = vpop.f32.mrf.mxu0
    %526 = vmatprep.mubr.f32.mxu0 0.0
    %527 = vmatmul.mubr.f32.gmra.mxu0 %v290
    %v528 = vpop.f32.mrf.mxu0
    %v529 = vadd.f32 %v385, %v528
    %v530 = vpop.f32.mrf.mxu0
    %531 = vdwg.mxu0
    %v532 = vmax.f32 %v454, 0.0
    %v533 = vmax.f32 %v459, 0.0
    %v534 = vmax.f32 %v464, 0.0
    %v535 = vmax.f32 %v469, 0.0
    %v536 = vmax.f32 %v474, 0.0
    %v537 = vmax.f32 %v479, 0.0
    %v538 = vmax.f32 %v484, 0.0
    %v539 = vmax.f32 %v489, 0.0
    %v540 = vmax.f32 %v494, 0.0
    %v541 = vmax.f32 %v499, 0.0
    %v542 = vmax.f32 %v504, 0.0
    %v543 = vmax.f32 %v509, 0.0
    %v544 = vmax.f32 %v514, 0.0
    %v545 = vmax.f32 %v519, 0.0
    %v546 = vmax.f32 %v524, 0.0
    %v547 = vmax.f32 %v529, 0.0
    %v548 = vld [vmem:[%s5] sm:$0x1]
    %s549 = sld [smem:[#allocation2]]
    %v550 = vstv %s549
    %551 = vmatprep.subr.mxu0 0.0
    %552 = vmatpush1.msra.mxu0 %v547
    %553 = vmatprep.subr.mxu0 0.0
    %554 = vmatpush1.msra.mxu0 %v546
    %555 = vmatprep.subr.mxu0 0.0
    %556 = vmatpush1.msra.mxu0 %v545
    %557 = vmatprep.subr.mxu0 0.0
    %558 = vmatpush1.msra.mxu0 %v544
    %559 = vmatprep.subr.mxu0 0.0
    %560 = vmatpush1.msra.mxu0 %v543
    %561 = vmatprep.subr.mxu0 0.0
    %562 = vmatpush1.msra.mxu0 %v542
    %563 = vmatprep.subr.mxu0 0.0
    %564 = vmatpush1.msra.mxu0 %v541
    %565 = vmatprep.subr.mxu0 0.0
    %566 = vmatpush1.msra.mxu0 %v540
    %567 = vmatprep.subr.mxu0 0.0
    %568 = vmatpush1.msra.mxu0 %v539
    %569 = vmatprep.subr.mxu0 0.0
    %570 = vmatpush1.msra.mxu0 %v538
    %571 = vmatprep.subr.mxu0 0.0
    %572 = vmatpush1.msra.mxu0 %v537
    %573 = vmatprep.subr.mxu0 0.0
    %574 = vmatpush1.msra.mxu0 %v536
    %575 = vmatprep.subr.mxu0 0.0
    %576 = vmatpush1.msra.mxu0 %v535
    %577 = vmatprep.subr.mxu0 0.0
    %578 = vmatpush1.msra.mxu0 %v534
    %579 = vmatprep.subr.mxu0 0.0
    %580 = vmatpush1.msra.mxu0 %v533
    %581 = vmatprep.subr.mxu0 0.0
    %582 = vmatpush1.msra.mxu0 %v532
    %583 = vmatprep.subr.mxu0 0.0
    %584 = vmatpush2.msra.mxu0 0.0
    %585 = vmatprep.subr.mxu0 0.0
    %586 = vmatpush2.msra.mxu0 0.0
    %587 = vmatprep.subr.mxu0 0.0
    %588 = vmatpush2.msra.mxu0 0.0
    %589 = vmatprep.subr.mxu0 0.0
    %590 = vmatpush2.msra.mxu0 0.0
    %591 = vmatprep.subr.mxu0 0.0
    %592 = vmatpush2.msra.mxu0 0.0
    %593 = vmatprep.subr.mxu0 0.0
    %594 = vmatpush2.msra.mxu0 0.0
    %595 = vmatprep.subr.mxu0 0.0
    %596 = vmatpush2.msra.mxu0 0.0
    %597 = vmatprep.subr.mxu0 0.0
    %598 = vmatpush2.msra.mxu0 0.0
    %599 = vmatprep.subr.mxu0 0.0
    %600 = vmatpush2.msra.mxu0 0.0
    %601 = vmatprep.subr.mxu0 0.0
    %602 = vmatpush2.msra.mxu0 0.0
    %603 = vmatprep.subr.mxu0 0.0
    %604 = vmatpush2.msra.mxu0 0.0
    %605 = vmatprep.subr.mxu0 0.0
    %606 = vmatpush2.msra.mxu0 0.0
    %607 = vmatprep.subr.mxu0 0.0
    %608 = vmatpush2.msra.mxu0 0.0
    %609 = vmatprep.subr.mxu0 0.0
    %610 = vmatpush2.msra.mxu0 0.0
    %611 = vmatprep.subr.mxu0 0.0
    %612 = vmatpush2.msra.mxu0 0.0
    %613 = vmatprep.subr.mxu0 0.0
    %614 = vmatpush2.msra.mxu0 0.0
    %615 = vmatprep.mubr.f32.mxu0 0.0
    %616 = vmatmul.mubr.f32.gmra.mxu0 %v548
    %v617 = vpop.f32.mrf.mxu0
    %v618 = vadd.f32 %v550, %v617
    %v619 = vpop.f32.mrf.mxu0
    %620 = vdwg.mxu0
    %621 = vst [vmem:[#allocation3] sm:$0x1] %v618
    // Predicated region
    $region30: #{tpu_custom_call.1} parent=1 // pred_check
      _
    $region31: #{tpu_custom_call.1} parent=1 // pred_check_branch
      %623 = sbr.rel (0) target = $region33
    $region32: #{tpu_custom_call.1} parent=1 // pred_region
      %s625 = ssub.s32 16, 16
      %626 = vsyncadd [#allocation4], %s625
      %s628 = sshll.u32 [#allocation3], 4
      %s629 = int_to_ptr.vmem [resolvable:$true] %s628
      %631 = dma.vmem_to_hbm [thread:$0]  %s629, 16, %s7, [#allocation4]
    $region33: #{tpu_custom_call.1} parent=1 // pred_fallthru
      _
    // Predicated region
    $region34: #{tpu_custom_call.1} parent=1 // pred_check
      _
    $region35: #{tpu_custom_call.1} parent=1 // pred_check_branch
      %633 = sbr.rel (0) target = $region37
    $region36: #{tpu_custom_call.1} parent=1 // pred_region
      %634 = dma.done [#allocation4], 16
    $region37: #{tpu_custom_call.1} parent=1 // pred_fallthru
      _
    %635 = vsyncpa [#allocation4], 1

</llo_original>
